<compile_context>
chip_gen: v6e
topology: v6e:2x2x1
jax: 0.10.0
libtpu: 0.0.40
codegen_flags: <defaults>
</compile_context>

<pallas_src>
import functools

import jax
import jax.numpy as jnp
from jax.experimental import pallas as pl
from jax.experimental.pallas import tpu as pltpu


def _round_up(x, m):
    return (x + m - 1) // m * m


def _hard_swish(x):
    # f_hard_swish(x) = relu6(x + 3) / 6 * x   (kept in f32)
    return jnp.clip(x + 3.0, 0.0, 6.0) * (1.0 / 6.0) * x


# ---------------------------------------------------------------------------
# Kernel
# ---------------------------------------------------------------------------
def _make_densenet_kernel(inp_pad, act_w, out_dim, row_offs):
    """Bake slab row offsets / widths in as Python constants."""
    o0, o1, o2, o3 = row_offs

    def kernel(x_ref, w_ref, b_ref, o_ref):
        def mm(a_bf16, w_bf16):
            # bf16 operands into the MXU, f32 accumulation.
            return jnp.dot(a_bf16, w_bf16, preferred_element_type=jnp.float32)

        x0 = x_ref[...].astype(jnp.bfloat16)          # [BM, inp_pad]

        # Static, 16-row-aligned slices of the packed bf16 weight slab.  Each
        # block is full lane width (act_w) -- no narrow column slices.
        w0 = w_ref[o0:o0 + inp_pad, :]                # [inp_pad, act_w]
        w1 = w_ref[o1:o1 + act_w, :]                  # [act_w,   act_w]
        w2 = w_ref[o2:o2 + act_w, :]                  # [act_w,   act_w]
        wo = w_ref[o3:o3 + act_w, :]                  # [act_w,   act_w]

        b0 = b_ref[0:1, :]                            # lane-placed f32 biases
        b1 = b_ref[1:2, :]
        b2 = b_ref[2:3, :]
        bo = b_ref[3:4, :]

        # dense0: x1 lands in lanes [0, mid); other lanes stay exactly zero.
        act_f32 = _hard_swish(mm(x0, w0) + b0)        # [BM, act_w]
        act = act_f32.astype(jnp.bfloat16)

        # dense1: h1 lands in lanes [mid, 2*mid).  The lane-disjoint VALU add
        # realizes torch.cat((x1, h1), dim=1) with no data movement.
        act_f32 = act_f32 + _hard_swish(mm(act, w1) + b1)
        act = act_f32.astype(jnp.bfloat16)

        # dense2: h2 lands in lanes [2*mid, 4*mid); act becomes cat(x1,h1,h2).
        act_f32 = act_f32 + _hard_swish(mm(act, w2) + b2)
        act = act_f32.astype(jnp.bfloat16)

        # dropout: identity (eval mode)

        # dense_o: store only the real out_dim lanes (masked vst, narrow HBM
        # write-back).
        out = mm(act, wo) + bo                        # [BM, act_w]
        o_ref[...] = out[:, :out_dim]

    return kernel


# ---------------------------------------------------------------------------
# Host-side packing
# ---------------------------------------------------------------------------
_ROW_ALIGN = 16  # bf16 sublane packing: keep every block's row offset 16-aligned


def pack_params(params, inp_dim, mid_dim, out_dim):
    """Pack all weights into one lane-offset bf16 slab, all biases into one f32 slab.

    Output-column placement inside each act_w-wide block reproduces the
    torch.cat lane layout (x1 | h1 | h2), so dense1 / dense2 / dense_o each
    run as a single matmul against the running lane-packed activation.
    Pad columns/rows are zero, so unused lanes of the activation remain zero.
    """
    (w0, b0, w1, b1, w2, b2, wo, bo) = params
    mid = mid_dim
    act_w = max(128, _round_up(4 * mid, 128))
    inp_pad = _round_up(inp_dim, _ROW_ALIGN)
    assert out_dim <= act_w, "out_dim must fit within the lane-packed width"

    o0 = 0
    o1 = o0 + inp_pad
    o2 = o1 + act_w
    o3 = o2 + act_w
    rows = o3 + act_w

    slab = jnp.zeros((rows, act_w), jnp.float32)
    slab = slab.at[o0:o0 + inp_dim, 0:mid].set(w0)             # dense0
    slab = slab.at[o1:o1 + mid, mid:2 * mid].set(w1)           # dense1
    slab = slab.at[o2:o2 + 2 * mid, 2 * mid:4 * mid].set(w2)   # dense2
    slab = slab.at[o3:o3 + 4 * mid, 0:out_dim].set(wo)         # dense_o
    w_slab = slab.astype(jnp.bfloat16)

    b_slab = jnp.zeros((8, act_w), jnp.float32)
    b_slab = b_slab.at[0, 0:mid].set(b0[0])
    b_slab = b_slab.at[1, mid:2 * mid].set(b1[0])
    b_slab = b_slab.at[2, 2 * mid:4 * mid].set(b2[0])
    b_slab = b_slab.at[3, 0:out_dim].set(bo[0])

    return w_slab, b_slab, (o0, o1, o2, o3), act_w, inp_pad


# ---------------------------------------------------------------------------
# Wrapper
# ---------------------------------------------------------------------------
@functools.partial(jax.jit, static_argnames=("inp_pad", "act_w", "out_dim",
                                             "row_offs", "block_b"))
def densenet_forward(x0, w_slab, b_slab, *, inp_pad, act_w, out_dim,
                     row_offs, block_b=2048):
    B, d_in = x0.shape
    if d_in < inp_pad:                  # sublane-align the input features
        x0 = jnp.pad(x0, ((0, 0), (0, inp_pad - d_in)))

    # >= 2 grid steps whenever B allows it, so v7x's 2 TensorCores both get
    # work; large default block_b amortizes the ~0.35us per-step overhead.
    if B >= 16:
        bm = min(block_b, _round_up(pl.cdiv(B, 2), 8))
    else:
        bm = min(block_b, B)
    grid = (pl.cdiv(B, bm),)

    kernel = _make_densenet_kernel(inp_pad, act_w, out_dim, row_offs)

    return pl.pallas_call(
        kernel,
        out_shape=jax.ShapeDtypeStruct((B, out_dim), jnp.float32),
        grid_spec=pltpu.PrefetchScalarGridSpec(
            num_scalar_prefetch=0,
            grid=grid,
            in_specs=[
                # batch-tiled activations
                pl.BlockSpec((bm, inp_pad), lambda i: (i, 0)),
                # weights / biases: whole-array resident in VMEM (~100 KiB bf16
                # + 4 KiB f32 at mid_dim=32; re-derive the budget / consider
                # single-buffering these invariant operands if mid_dim is ever
                # scaled up, esp. on v7x's 64 MiB VMEM).
                pl.BlockSpec(w_slab.shape, lambda i: (0, 0)),
                pl.BlockSpec(b_slab.shape, lambda i: (0, 0)),
            ],
            # Narrow (out_dim-wide) output block: last dim equals the full
            # array dim, so it's legal; no lane-padded f32 write-back.
            out_specs=pl.BlockSpec((bm, out_dim), lambda i: (i, 0)),
        ),
        compiler_params=pltpu.CompilerParams(
            dimension_semantics=("parallel",),      # shard batch on v7x's 2 TCs
            vmem_limit_bytes=32 * 1024 * 1024),
    )(x0, w_slab, b_slab)


# ---------------------------------------------------------------------------
# Init + pure-JAX reference
# ---------------------------------------------------------------------------
def init_params(key, inp_dim, mid_dim, out_dim):
    """PyTorch Linear-like init; weights stored transposed as [in, out]."""
    def linear(k, fan_in, fan_out):
        kw, kb = jax.random.split(k)
        bound = 1.0 / jnp.sqrt(float(fan_in))
        w = jax.random.uniform(kw, (fan_in, fan_out), jnp.float32, -bound, bound)
        b = jax.random.uniform(kb, (1, fan_out), jnp.float32, -bound, bound)
        return w, b

    k0, k1, k2, ko = jax.random.split(key, 4)
    w0, b0 = linear(k0, inp_dim, mid_dim)          # dense0
    w1, b1 = linear(k1, mid_dim, mid_dim)          # dense1
    w2, b2 = linear(k2, 2 * mid_dim, 2 * mid_dim)  # dense2
    wo, bo = linear(ko, 4 * mid_dim, out_dim)      # dense_o
    return (w0, b0, w1, b1, w2, b2, wo, bo)


def densenet_ref(x0, params):
    """Pure-JAX reference mirroring the kernel's bf16-operand / f32-accumulate math."""
    (w0, b0, w1, b1, w2, b2, wo, bo) = params
    bf16 = jnp.bfloat16

    def mm(a, w):
        return jnp.dot(a.astype(bf16), w.astype(bf16),
                       preferred_element_type=jnp.float32)

    x1 = _hard_swish(mm(x0, w0) + b0)
    x2 = jnp.concatenate([x1, _hard_swish(mm(x1, w1) + b1)], axis=1)
    x3 = jnp.concatenate([x2, _hard_swish(mm(x2, w2) + b2)], axis=1)
    return mm(x3, wo) + bo


if __name__ == "__main__":
    inp_dim, mid_dim, out_dim = 16, 32, 8
    batch = 8

    key = jax.random.PRNGKey(0)
    kx, kp = jax.random.split(key)
    x0 = jax.random.normal(kx, (batch, inp_dim), jnp.float32)
    params = init_params(kp, inp_dim, mid_dim, out_dim)

    w_slab, b_slab, row_offs, act_w, inp_pad = pack_params(
        params, inp_dim, mid_dim, out_dim)

    out = densenet_forward(
        x0, w_slab, b_slab,
        inp_pad=inp_pad, act_w=act_w, out_dim=out_dim, row_offs=row_offs)
    out = jax.block_until_ready(out)

    ref = densenet_ref(x0, params)
    assert out.shape == (batch, out_dim)
    assert jnp.allclose(out, ref, atol=1e-3, rtol=1e-3), "mismatch vs reference"

    print("KERNEL_OK")
</pallas_src>

<mosaic_0001>
module attributes {stable_mosaic.version = 11 : i64} {
  func.func @kernel(%arg0: i32, %arg1: memref<8x16xf32, #tpu.memory_space<vmem>>, %arg2: memref<400x128xbf16, #tpu.memory_space<vmem>>, %arg3: memref<8x128xf32, #tpu.memory_space<vmem>>, %arg4: memref<8x8xf32, #tpu.memory_space<vmem>>) attributes {dimension_semantics = [#tpu.dimension_semantics<parallel>], iteration_bounds = array<i64: 1>, scalar_prefetch = 0 : i64, scratch_operands = 0 : i64, tpu.core_type = #tpu.core_type<tc>, window_params = [{transform_indices = @transform_0, window_bounds = array<i64: 8, 16>}, {pipeline_mode = #tpu.pipeline_mode<synchronous>, transform_indices = @transform_1, window_bounds = array<i64: 400, 128>}, {pipeline_mode = #tpu.pipeline_mode<synchronous>, transform_indices = @transform_2, window_bounds = array<i64: 8, 128>}, {transform_indices = @transform_3, window_bounds = array<i64: 8, 8>}]} {
    %c0 = arith.constant 0 : index
    %c0_0 = arith.constant 0 : index
    %0 = vector.load %arg1[%c0, %c0_0] : memref<8x16xf32, #tpu.memory_space<vmem>>, vector<8x16xf32>
    %1 = arith.truncf %0 : vector<8x16xf32> to vector<8x16xbf16>
    %c0_1 = arith.constant 0 : index
    %c0_2 = arith.constant 0 : index
    %2 = vector.load %arg2[%c0_1, %c0_2] : memref<400x128xbf16, #tpu.memory_space<vmem>>, vector<16x128xbf16>
    %c16 = arith.constant 16 : index
    %c0_3 = arith.constant 0 : index
    %3 = vector.load %arg2[%c16, %c0_3] : memref<400x128xbf16, #tpu.memory_space<vmem>>, vector<128x128xbf16>
    %c144 = arith.constant 144 : index
    %c0_4 = arith.constant 0 : index
    %4 = vector.load %arg2[%c144, %c0_4] : memref<400x128xbf16, #tpu.memory_space<vmem>>, vector<128x128xbf16>
    %c272 = arith.constant 272 : index
    %c0_5 = arith.constant 0 : index
    %5 = vector.load %arg2[%c272, %c0_5] : memref<400x128xbf16, #tpu.memory_space<vmem>>, vector<128x128xbf16>
    %c0_6 = arith.constant 0 : index
    %c0_7 = arith.constant 0 : index
    %6 = vector.load %arg3[%c0_6, %c0_7] : memref<8x128xf32, #tpu.memory_space<vmem>>, vector<1x128xf32>
    %c1 = arith.constant 1 : index
    %c0_8 = arith.constant 0 : index
    %7 = vector.load %arg3[%c1, %c0_8] : memref<8x128xf32, #tpu.memory_space<vmem>>, vector<1x128xf32>
    %c2 = arith.constant 2 : index
    %c0_9 = arith.constant 0 : index
    %8 = vector.load %arg3[%c2, %c0_9] : memref<8x128xf32, #tpu.memory_space<vmem>>, vector<1x128xf32>
    %c3 = arith.constant 3 : index
    %c0_10 = arith.constant 0 : index
    %9 = vector.load %arg3[%c3, %c0_10] : memref<8x128xf32, #tpu.memory_space<vmem>>, vector<1x128xf32>
    %cst = arith.constant dense<0.000000e+00> : vector<8x128xf32>
    %10 = tpu.matmul %1, %2, %cst {dimension_numbers = #tpu.dot_dimension_numbers<[1], [0], [0], [1], [0, 0, 1, 1], [], []>} : vector<8x16xbf16>, vector<16x128xbf16>, vector<8x128xf32> -> vector<8x128xf32>
    %11 = vector.broadcast %6 : vector<1x128xf32> to vector<8x128xf32>
    %12 = arith.addf %10, %11 : vector<8x128xf32>
    %cst_11 = arith.constant 3.000000e+00 : f32
    %13 = vector.broadcast %cst_11 : f32 to vector<8x128xf32>
    %14 = arith.addf %12, %13 : vector<8x128xf32>
    %cst_12 = arith.constant 0.000000e+00 : f32
    %cst_13 = arith.constant 6.000000e+00 : f32
    %15 = vector.broadcast %cst_12 : f32 to vector<8x128xf32>
    %16 = arith.maximumf %15, %14 : vector<8x128xf32>
    %17 = vector.broadcast %cst_13 : f32 to vector<8x128xf32>
    %18 = arith.minimumf %17, %16 : vector<8x128xf32>
    %cst_14 = arith.constant 0.166666672 : f32
    %19 = vector.broadcast %cst_14 : f32 to vector<8x128xf32>
    %20 = arith.mulf %18, %19 : vector<8x128xf32>
    %21 = arith.mulf %20, %12 : vector<8x128xf32>
    %22 = arith.truncf %21 : vector<8x128xf32> to vector<8x128xbf16>
    %cst_15 = arith.constant dense<0.000000e+00> : vector<8x128xf32>
    %23 = tpu.matmul %22, %3, %cst_15 {dimension_numbers = #tpu.dot_dimension_numbers<[1], [0], [0], [1], [0, 0, 1, 1], [], []>} : vector<8x128xbf16>, vector<128x128xbf16>, vector<8x128xf32> -> vector<8x128xf32>
    %24 = vector.broadcast %7 : vector<1x128xf32> to vector<8x128xf32>
    %25 = arith.addf %23, %24 : vector<8x128xf32>
    %cst_16 = arith.constant 3.000000e+00 : f32
    %26 = vector.broadcast %cst_16 : f32 to vector<8x128xf32>
    %27 = arith.addf %25, %26 : vector<8x128xf32>
    %cst_17 = arith.constant 0.000000e+00 : f32
    %cst_18 = arith.constant 6.000000e+00 : f32
    %28 = vector.broadcast %cst_17 : f32 to vector<8x128xf32>
    %29 = arith.maximumf %28, %27 : vector<8x128xf32>
    %30 = vector.broadcast %cst_18 : f32 to vector<8x128xf32>
    %31 = arith.minimumf %30, %29 : vector<8x128xf32>
    %cst_19 = arith.constant 0.166666672 : f32
    %32 = vector.broadcast %cst_19 : f32 to vector<8x128xf32>
    %33 = arith.mulf %31, %32 : vector<8x128xf32>
    %34 = arith.mulf %33, %25 : vector<8x128xf32>
    %35 = arith.addf %21, %34 : vector<8x128xf32>
    %36 = arith.truncf %35 : vector<8x128xf32> to vector<8x128xbf16>
    %cst_20 = arith.constant dense<0.000000e+00> : vector<8x128xf32>
    %37 = tpu.matmul %36, %4, %cst_20 {dimension_numbers = #tpu.dot_dimension_numbers<[1], [0], [0], [1], [0, 0, 1, 1], [], []>} : vector<8x128xbf16>, vector<128x128xbf16>, vector<8x128xf32> -> vector<8x128xf32>
    %38 = vector.broadcast %8 : vector<1x128xf32> to vector<8x128xf32>
    %39 = arith.addf %37, %38 : vector<8x128xf32>
    %cst_21 = arith.constant 3.000000e+00 : f32
    %40 = vector.broadcast %cst_21 : f32 to vector<8x128xf32>
    %41 = arith.addf %39, %40 : vector<8x128xf32>
    %cst_22 = arith.constant 0.000000e+00 : f32
    %cst_23 = arith.constant 6.000000e+00 : f32
    %42 = vector.broadcast %cst_22 : f32 to vector<8x128xf32>
    %43 = arith.maximumf %42, %41 : vector<8x128xf32>
    %44 = vector.broadcast %cst_23 : f32 to vector<8x128xf32>
    %45 = arith.minimumf %44, %43 : vector<8x128xf32>
    %cst_24 = arith.constant 0.166666672 : f32
    %46 = vector.broadcast %cst_24 : f32 to vector<8x128xf32>
    %47 = arith.mulf %45, %46 : vector<8x128xf32>
    %48 = arith.mulf %47, %39 : vector<8x128xf32>
    %49 = arith.addf %35, %48 : vector<8x128xf32>
    %50 = arith.truncf %49 : vector<8x128xf32> to vector<8x128xbf16>
    %cst_25 = arith.constant dense<0.000000e+00> : vector<8x128xf32>
    %51 = tpu.matmul %50, %5, %cst_25 {dimension_numbers = #tpu.dot_dimension_numbers<[1], [0], [0], [1], [0, 0, 1, 1], [], []>} : vector<8x128xbf16>, vector<128x128xbf16>, vector<8x128xf32> -> vector<8x128xf32>
    %52 = vector.broadcast %9 : vector<1x128xf32> to vector<8x128xf32>
    %53 = arith.addf %51, %52 : vector<8x128xf32>
    %54 = vector.extract_strided_slice %53 {offsets = [0, 0], sizes = [8, 8], strides = [1, 1]} : vector<8x128xf32> to vector<8x8xf32>
    %c0_26 = arith.constant 0 : index
    %c0_27 = arith.constant 0 : index
    %55 = vector.load %arg4[%c0_26, %c0_27] : memref<8x8xf32, #tpu.memory_space<vmem>>, vector<8x8xf32>
    tpu.vector_store %arg4[%c0_26, %c0_27], %54 {strides = array<i32>} : memref<8x8xf32, #tpu.memory_space<vmem>>, vector<8x8xf32>,
    return
  }
  func.func @transform_0(%arg0: i32) -> (i32, i32) {
    %c0_i32 = arith.constant 0 : i32
    %c0_i32_0 = arith.constant 0 : i32
    return %arg0, %c0_i32 : i32, i32
  }
  func.func @transform_1(%arg0: i32) -> (i32, i32) {
    %c0_i32 = arith.constant 0 : i32
    %c0_i32_0 = arith.constant 0 : i32
    %c0_i32_1 = arith.constant 0 : i32
    return %c0_i32, %c0_i32_0 : i32, i32
  }
  func.func @transform_2(%arg0: i32) -> (i32, i32) {
    %c0_i32 = arith.constant 0 : i32
    %c0_i32_0 = arith.constant 0 : i32
    %c0_i32_1 = arith.constant 0 : i32
    return %c0_i32, %c0_i32_0 : i32, i32
  }
  func.func @transform_3(%arg0: i32) -> (i32, i32) {
    %c0_i32 = arith.constant 0 : i32
    %c0_i32_0 = arith.constant 0 : i32
    return %arg0, %c0_i32 : i32, i32
  }
}

</mosaic_0001>

<llo_original>
// kernel: densenet_forward.1
$region0: #{densenet_forward.1}
  #allocation0 [shape = 'u32[]', space=smem, size = 0x4, offset = 0x4, fixed_abs, tag = 'smem constant byte address 0x4 - core index']
  #allocation1 [shape = 'u32[144,128]{1,0:T(1,128)}', space=vmem, size = 0x12000, scoped, tag = 'internal scratch']
  %s0 = inlined_call_operand.hbm [shape: f32[8,16], index: 0, kind: input, shape index: {}]
  %s1 = inlined_call_operand.hbm [shape: bf16[400,128], index: 1, kind: input, shape index: {}]
  %s2 = inlined_call_operand.hbm [shape: f32[8,128], index: 2, kind: input, shape index: {}]
  %s3 = inlined_call_operand.hbm [shape: f32[8,8], index: 3, kind: output, shape index: {}]
  %s4 = sld [smem:[#allocation0]]
  $region34: #{densenet_forward.1} parent=0
    _
  %s6 = ssub.s32 1, %s4
  %s7 = scalar_select 0, %s6, %s4
  $region1: #{densenet_forward.1} parent=0
    #allocation2 [shape = 'u8[4096]{0}', space=vmem, size = 0x1000, scoped, tag = 'input window, operand 0, single buffered']
    #allocation3 [shape = 's32[1]{0}', space=sflag, size = 0x4, scoped, tag = 'scoped memory for densenet_forward.1']
    #allocation4 [shape = 's32[1]{0}', space=sflag, size = 0x4, scoped, tag = 'scoped memory for densenet_forward.1']
    #allocation5 [shape = 'u8[102400]{0}', space=vmem, size = 0x19000, scoped, tag = 'input window, operand 1, single buffered']
    #allocation6 [shape = 's32[1]{0}', space=sflag, size = 0x4, scoped, tag = 'scoped memory for densenet_forward.1']
    #allocation7 [shape = 'u8[4096]{0}', space=vmem, size = 0x1000, scoped, tag = 'input window, operand 2, single buffered']
    #allocation8 [shape = 'u8[4096]{0}', space=vmem, size = 0x1000, scoped, tag = 'output window, operand 0, single buffered']
    %8 = vsyncpa [#allocation3], 0
    %9 = vsyncpa [#allocation6], 0
    %10 = vsyncpa [#allocation4], 0
    // Predicated region
    $region2: #{densenet_forward.1} parent=1 // pred_check
      _
    $region3: #{densenet_forward.1} parent=1 // pred_check_branch
      %12 = sbr.rel (0) target = $region5
    $region4: #{densenet_forward.1} parent=1 // pred_region
      %s14 = ssub.s32 128, 128
      %15 = vsyncadd [#allocation3], %s14
      %s17 = sshll.u32 [#allocation2], 4
      %s18 = int_to_ptr.vmem [resolvable:$true] %s17
      %20 = dma.hbm_to_vmem [thread:$0]  %s0, 128, %s18, [#allocation3]
    $region5: #{densenet_forward.1} parent=1 // pred_fallthru
      _
    // Predicated region
    $region6: #{densenet_forward.1} parent=1 // pred_check
      _
    $region7: #{densenet_forward.1} parent=1 // pred_check_branch
      %22 = sbr.rel (0) target = $region9
    $region8: #{densenet_forward.1} parent=1 // pred_region
      %s24 = ssub.s32 3200, 3200
      %25 = vsyncadd [#allocation6], %s24
      %s26 = sshll.u32 [#allocation5], 4
      %s27 = int_to_ptr.vmem [resolvable:$true] %s26
      %32 = dma.hbm_to_vmem [thread:$0]  %s1, 3200, %s27, [#allocation6], 64, 64, 4
    $region9: #{densenet_forward.1} parent=1 // pred_fallthru
      _
    // Predicated region
    $region10: #{densenet_forward.1} parent=1 // pred_check
      _
    $region11: #{densenet_forward.1} parent=1 // pred_check_branch
      %34 = sbr.rel (0) target = $region13
    $region12: #{densenet_forward.1} parent=1 // pred_region
      %s36 = ssub.s32 128, 128
      %37 = vsyncadd [#allocation6], %s36
      %s39 = sshll.u32 [#allocation7], 4
      %s40 = int_to_ptr.vmem [resolvable:$true] %s39
      %42 = dma.hbm_to_vmem [thread:$0]  %s2, 128, %s40, [#allocation6]
    $region13: #{densenet_forward.1} parent=1 // pred_fallthru
      _
    // Predicated region
    $region14: #{densenet_forward.1} parent=1 // pred_check
      _
    $region15: #{densenet_forward.1} parent=1 // pred_check_branch
      %44 = sbr.rel (0) target = $region17
    $region16: #{densenet_forward.1} parent=1 // pred_region
      %45 = dma.done [#allocation3], 128
    $region17: #{densenet_forward.1} parent=1 // pred_fallthru
      _
    // Predicated region
    $region18: #{densenet_forward.1} parent=1 // pred_check
      _
    $region19: #{densenet_forward.1} parent=1 // pred_check_branch
      %47 = sbr.rel (0) target = $region21
    $region20: #{densenet_forward.1} parent=1 // pred_region
      %48 = dma.done [#allocation6], 3200
    $region21: #{densenet_forward.1} parent=1 // pred_fallthru
      _
    // Predicated region
    $region22: #{densenet_forward.1} parent=1 // pred_check
      _
    $region23: #{densenet_forward.1} parent=1 // pred_check_branch
      %50 = sbr.rel (0) target = $region25
    $region24: #{densenet_forward.1} parent=1 // pred_region
      %51 = dma.done [#allocation6], 128
    $region25: #{densenet_forward.1} parent=1 // pred_fallthru
      _
    %v53 = vld [vmem:[#allocation2] sm:$0xff]
    %v54 = vpack.c.bf16 %v53, %v53
    %v55 = vld [vmem:[#allocation5] sm:$0xf]
    %v56 = vld [vmem:[#allocation5 + $0x4] sm:$0xf]
    %v57 = vld [vmem:[#allocation5 + $0x8] sm:$0xf]
    %v58 = vld [vmem:[#allocation5 + $0xc] sm:$0xf]
    %v59 = vld [vmem:[#allocation5 + $0x10] sm:$0xf]
    %v60 = vld [vmem:[#allocation5 + $0x14] sm:$0xf]
    %v61 = vld [vmem:[#allocation5 + $0x18] sm:$0xf]
    %v62 = vld [vmem:[#allocation5 + $0x1c] sm:$0xf]
    %v63 = vld [vmem:[#allocation5 + $0x20] sm:$0xf]
    %v64 = vld [vmem:[#allocation5 + $0x24] sm:$0xf]
    %v65 = vld [vmem:[#allocation5 + $0x28] sm:$0xf]
    %v66 = vld [vmem:[#allocation5 + $0x2c] sm:$0xf]
    %v67 = vld [vmem:[#allocation5 + $0x30] sm:$0xf]
    %v68 = vld [vmem:[#allocation5 + $0x34] sm:$0xf]
    %v69 = vld [vmem:[#allocation5 + $0x38] sm:$0xf]
    %v70 = vld [vmem:[#allocation5 + $0x3c] sm:$0xf]
    %v71 = vld [vmem:[#allocation5 + $0x40] sm:$0xf]
    %v72 = vld [vmem:[#allocation5 + $0x44] sm:$0xf]
    %v73 = vld [vmem:[#allocation5 + $0x48] sm:$0xf]
    %v74 = vld [vmem:[#allocation5 + $0x4c] sm:$0xf]
    %v75 = vld [vmem:[#allocation5 + $0x50] sm:$0xf]
    %v76 = vld [vmem:[#allocation5 + $0x54] sm:$0xf]
    %v77 = vld [vmem:[#allocation5 + $0x58] sm:$0xf]
    %v78 = vld [vmem:[#allocation5 + $0x5c] sm:$0xf]
    %v79 = vld [vmem:[#allocation5 + $0x60] sm:$0xf]
    %v80 = vld [vmem:[#allocation5 + $0x64] sm:$0xf]
    %v81 = vld [vmem:[#allocation5 + $0x68] sm:$0xf]
    %v82 = vld [vmem:[#allocation5 + $0x6c] sm:$0xf]
    %v83 = vld [vmem:[#allocation5 + $0x70] sm:$0xf]
    %v84 = vld [vmem:[#allocation5 + $0x74] sm:$0xf]
    %v85 = vld [vmem:[#allocation5 + $0x78] sm:$0xf]
    %v86 = vld [vmem:[#allocation5 + $0x7c] sm:$0xf]
    %v87 = vld [vmem:[#allocation5 + $0x80] sm:$0xf]
    %v88 = vld [vmem:[#allocation5 + $0x84] sm:$0xf]
    %v89 = vld [vmem:[#allocation5 + $0x88] sm:$0xf]
    %v90 = vld [vmem:[#allocation5 + $0x8c] sm:$0xf]
    %v91 = vld [vmem:[#allocation5 + $0x90] sm:$0xf]
    %v92 = vld [vmem:[#allocation5 + $0x94] sm:$0xf]
    %v93 = vld [vmem:[#allocation5 + $0x98] sm:$0xf]
    %v94 = vld [vmem:[#allocation5 + $0x9c] sm:$0xf]
    %v95 = vld [vmem:[#allocation5 + $0xa0] sm:$0xf]
    %v96 = vld [vmem:[#allocation5 + $0xa4] sm:$0xf]
    %v97 = vld [vmem:[#allocation5 + $0xa8] sm:$0xf]
    %v98 = vld [vmem:[#allocation5 + $0xac] sm:$0xf]
    %v99 = vld [vmem:[#allocation5 + $0xb0] sm:$0xf]
    %v100 = vld [vmem:[#allocation5 + $0xb4] sm:$0xf]
    %v101 = vld [vmem:[#allocation5 + $0xb8] sm:$0xf]
    %v102 = vld [vmem:[#allocation5 + $0xbc] sm:$0xf]
    %v103 = vld [vmem:[#allocation5 + $0xc0] sm:$0xf]
    %v104 = vld [vmem:[#allocation5 + $0xc4] sm:$0xf]
    %v105 = vld [vmem:[#allocation7] sm:$0x1]
    %v106 = vld [vmem:[#allocation7 + $0x1] sm:$0x1]
    %v107 = vld [vmem:[#allocation7 + $0x2] sm:$0x1]
    %v108 = vld [vmem:[#allocation7 + $0x3] sm:$0x1]
    %v109 = vlaneseq
    %v110 = vshrl.u32 %v109, 7
    %v111 = vsub.s32 0, %v110
    %v112 = vrot.slane %v105, %v111
    %v115 = vunpack.c.l.b16 %v55
    %v116 = vunpack.c.l.b16 %v56
    %v117 = vpack.c.b16 %v116, %v115
    %vm119 = vcmask 130048
    %v121 = vsel %vm119, %v54, 0
    %123 = vmatprep.subr.bf16.mxu0 0
    %124 = vmatpush1.bf16.msra.mxu0 0
    %125 = vmatprep.subr.bf16.mxu0 0
    %126 = vmatpush1.bf16.msra.mxu0 0
    %127 = vmatprep.subr.bf16.mxu0 0
    %128 = vmatpush1.bf16.msra.mxu0 0
    %129 = vmatprep.subr.bf16.mxu0 0
    %130 = vmatpush1.bf16.msra.mxu0 0
    %131 = vmatprep.subr.bf16.mxu0 0
    %132 = vmatpush1.bf16.msra.mxu0 0
    %133 = vmatprep.subr.bf16.mxu0 0
    %134 = vmatpush1.bf16.msra.mxu0 0
    %135 = vmatprep.subr.bf16.mxu0 0
    %136 = vmatpush1.bf16.msra.mxu0 0
    %137 = vmatprep.subr.bf16.mxu0 0
    %138 = vmatpush1.bf16.msra.mxu0 %v117
    %139 = vmatprep.subr.bf16.mxu0 0
    %140 = vmatpush2.bf16.msra.mxu0 0
    %141 = vmatprep.subr.bf16.mxu0 0
    %142 = vmatpush2.bf16.msra.mxu0 0
    %143 = vmatprep.subr.bf16.mxu0 0
    %144 = vmatpush2.bf16.msra.mxu0 0
    %145 = vmatprep.subr.bf16.mxu0 0
    %146 = vmatpush2.bf16.msra.mxu0 0
    %147 = vmatprep.subr.bf16.mxu0 0
    %148 = vmatpush2.bf16.msra.mxu0 0
    %149 = vmatprep.subr.bf16.mxu0 0
    %150 = vmatpush2.bf16.msra.mxu0 0
    %151 = vmatprep.subr.bf16.mxu0 0
    %152 = vmatpush2.bf16.msra.mxu0 0
    %153 = vmatprep.subr.bf16.mxu0 0
    %154 = vmatpush2.bf16.msra.mxu0 0
    %155 = vmatprep.mubr.bf16.mxu0 0
    %156 = vmatmul.mubr.bf16.gmra.mxu0 %v121
    %v157 = vpop.f32.mrf.mxu0
    %v158 = vadd.f32 %v112, %v157
    %v159 = vpop.f32.mrf.mxu0
    %v160 = vpop.f32.mrf.mxu0
    %v161 = vpop.f32.mrf.mxu0
    %162 = vdwg.mxu0
    %v163 = vadd.f32 %v158, 3.0
    %v164 = vmax.f32 %v163, 0.0
    %v165 = vmin.f32 %v164, 6.0
    %v166 = vmul.f32 %v165, 0.16666667
    %v167 = vmul.f32 %v166, %v158
    %v168 = vpack.c.bf16 %v167, %v167
    %v169 = vlaneseq
    %v170 = vshrl.u32 %v169, 7
    %v171 = vsub.s32 0, %v170
    %v172 = vrot.slane %v106, %v171
    %v189 = vunpack.c.l.b16 %v57
    %v190 = vunpack.c.l.b16 %v58
    %v191 = vunpack.c.l.b16 %v59
    %v192 = vunpack.c.l.b16 %v60
    %v193 = vunpack.c.l.b16 %v61
    %v194 = vunpack.c.l.b16 %v62
    %v195 = vunpack.c.l.b16 %v63
    %v196 = vunpack.c.l.b16 %v64
    %v197 = vunpack.c.l.b16 %v65
    %v198 = vunpack.c.l.b16 %v66
    %v199 = vunpack.c.l.b16 %v67
    %v200 = vunpack.c.l.b16 %v68
    %v201 = vunpack.c.l.b16 %v69
    %v202 = vunpack.c.l.b16 %v70
    %v203 = vunpack.c.l.b16 %v71
    %v204 = vunpack.c.l.b16 %v72
    %v205 = vpack.c.b16 %v190, %v189
    %v206 = vpack.c.b16 %v192, %v191
    %v207 = vpack.c.b16 %v194, %v193
    %v208 = vpack.c.b16 %v196, %v195
    %v209 = vpack.c.b16 %v198, %v197
    %v210 = vpack.c.b16 %v200, %v199
    %v211 = vpack.c.b16 %v202, %v201
    %v212 = vpack.c.b16 %v204, %v203
    %221 = vmatprep.subr.bf16.mxu0 0
    %222 = vmatpush1.bf16.msra.mxu0 %v212
    %223 = vmatprep.subr.bf16.mxu0 0
    %224 = vmatpush1.bf16.msra.mxu0 %v211
    %225 = vmatprep.subr.bf16.mxu0 0
    %226 = vmatpush1.bf16.msra.mxu0 %v210
    %227 = vmatprep.subr.bf16.mxu0 0
    %228 = vmatpush1.bf16.msra.mxu0 %v209
    %229 = vmatprep.subr.bf16.mxu0 0
    %230 = vmatpush1.bf16.msra.mxu0 %v208
    %231 = vmatprep.subr.bf16.mxu0 0
    %232 = vmatpush1.bf16.msra.mxu0 %v207
    %233 = vmatprep.subr.bf16.mxu0 0
    %234 = vmatpush1.bf16.msra.mxu0 %v206
    %235 = vmatprep.subr.bf16.mxu0 0
    %236 = vmatpush1.bf16.msra.mxu0 %v205
    %237 = vmatprep.subr.bf16.mxu0 0
    %238 = vmatpush2.bf16.msra.mxu0 0
    %239 = vmatprep.subr.bf16.mxu0 0
    %240 = vmatpush2.bf16.msra.mxu0 0
    %241 = vmatprep.subr.bf16.mxu0 0
    %242 = vmatpush2.bf16.msra.mxu0 0
    %243 = vmatprep.subr.bf16.mxu0 0
    %244 = vmatpush2.bf16.msra.mxu0 0
    %245 = vmatprep.subr.bf16.mxu0 0
    %246 = vmatpush2.bf16.msra.mxu0 0
    %247 = vmatprep.subr.bf16.mxu0 0
    %248 = vmatpush2.bf16.msra.mxu0 0
    %249 = vmatprep.subr.bf16.mxu0 0
    %250 = vmatpush2.bf16.msra.mxu0 0
    %251 = vmatprep.subr.bf16.mxu0 0
    %252 = vmatpush2.bf16.msra.mxu0 0
    %253 = vmatprep.mubr.bf16.mxu0 0
    %254 = vmatmul.mubr.bf16.gmra.mxu0 %v168
    %v255 = vpop.f32.mrf.mxu0
    %v256 = vadd.f32 %v172, %v255
    %v257 = vpop.f32.mrf.mxu0
    %v258 = vpop.f32.mrf.mxu0
    %v259 = vpop.f32.mrf.mxu0
    %260 = vdwg.mxu0
    %v261 = vadd.f32 %v256, 3.0
    %v262 = vmax.f32 %v261, 0.0
    %v263 = vmin.f32 %v262, 6.0
    %v264 = vmul.f32 %v263, 0.16666667
    %v265 = vmul.f32 %v264, %v256
    %v266 = vadd.f32 %v167, %v265
    %v267 = vpack.c.bf16 %v266, %v266
    %v268 = vlaneseq
    %v269 = vshrl.u32 %v268, 7
    %v270 = vsub.s32 0, %v269
    %v271 = vrot.slane %v107, %v270
    %v288 = vunpack.c.l.b16 %v73
    %v289 = vunpack.c.l.b16 %v74
    %v290 = vunpack.c.l.b16 %v75
    %v291 = vunpack.c.l.b16 %v76
    %v292 = vunpack.c.l.b16 %v77
    %v293 = vunpack.c.l.b16 %v78
    %v294 = vunpack.c.l.b16 %v79
    %v295 = vunpack.c.l.b16 %v80
    %v296 = vunpack.c.l.b16 %v81
    %v297 = vunpack.c.l.b16 %v82
    %v298 = vunpack.c.l.b16 %v83
    %v299 = vunpack.c.l.b16 %v84
    %v300 = vunpack.c.l.b16 %v85
    %v301 = vunpack.c.l.b16 %v86
    %v302 = vunpack.c.l.b16 %v87
    %v303 = vunpack.c.l.b16 %v88
    %v304 = vpack.c.b16 %v289, %v288
    %v305 = vpack.c.b16 %v291, %v290
    %v306 = vpack.c.b16 %v293, %v292
    %v307 = vpack.c.b16 %v295, %v294
    %v308 = vpack.c.b16 %v297, %v296
    %v309 = vpack.c.b16 %v299, %v298
    %v310 = vpack.c.b16 %v301, %v300
    %v311 = vpack.c.b16 %v303, %v302
    %320 = vmatprep.subr.bf16.mxu0 0
    %321 = vmatpush1.bf16.msra.mxu0 %v311
    %322 = vmatprep.subr.bf16.mxu0 0
    %323 = vmatpush1.bf16.msra.mxu0 %v310
    %324 = vmatprep.subr.bf16.mxu0 0
    %325 = vmatpush1.bf16.msra.mxu0 %v309
    %326 = vmatprep.subr.bf16.mxu0 0
    %327 = vmatpush1.bf16.msra.mxu0 %v308
    %328 = vmatprep.subr.bf16.mxu0 0
    %329 = vmatpush1.bf16.msra.mxu0 %v307
    %330 = vmatprep.subr.bf16.mxu0 0
    %331 = vmatpush1.bf16.msra.mxu0 %v306
    %332 = vmatprep.subr.bf16.mxu0 0
    %333 = vmatpush1.bf16.msra.mxu0 %v305
    %334 = vmatprep.subr.bf16.mxu0 0
    %335 = vmatpush1.bf16.msra.mxu0 %v304
    %336 = vmatprep.subr.bf16.mxu0 0
    %337 = vmatpush2.bf16.msra.mxu0 0
    %338 = vmatprep.subr.bf16.mxu0 0
    %339 = vmatpush2.bf16.msra.mxu0 0
    %340 = vmatprep.subr.bf16.mxu0 0
    %341 = vmatpush2.bf16.msra.mxu0 0
    %342 = vmatprep.subr.bf16.mxu0 0
    %343 = vmatpush2.bf16.msra.mxu0 0
    %344 = vmatprep.subr.bf16.mxu0 0
    %345 = vmatpush2.bf16.msra.mxu0 0
    %346 = vmatprep.subr.bf16.mxu0 0
    %347 = vmatpush2.bf16.msra.mxu0 0
    %348 = vmatprep.subr.bf16.mxu0 0
    %349 = vmatpush2.bf16.msra.mxu0 0
    %350 = vmatprep.subr.bf16.mxu0 0
    %351 = vmatpush2.bf16.msra.mxu0 0
    %352 = vmatprep.mubr.bf16.mxu0 0
    %353 = vmatmul.mubr.bf16.gmra.mxu0 %v267
    %v354 = vpop.f32.mrf.mxu0
    %v355 = vadd.f32 %v271, %v354
    %v356 = vpop.f32.mrf.mxu0
    %v357 = vpop.f32.mrf.mxu0
    %v358 = vpop.f32.mrf.mxu0
    %359 = vdwg.mxu0
    %v360 = vadd.f32 %v355, 3.0
    %v361 = vmax.f32 %v360, 0.0
    %v362 = vmin.f32 %v361, 6.0
    %v363 = vmul.f32 %v362, 0.16666667
    %v364 = vmul.f32 %v363, %v355
    %v365 = vadd.f32 %v266, %v364
    %v366 = vpack.c.bf16 %v365, %v365
    %v367 = vlaneseq
    %v368 = vshrl.u32 %v367, 7
    %v369 = vsub.s32 0, %v368
    %v370 = vrot.slane %v108, %v369
    %v387 = vunpack.c.l.b16 %v89
    %v388 = vunpack.c.l.b16 %v90
    %v389 = vunpack.c.l.b16 %v91
    %v390 = vunpack.c.l.b16 %v92
    %v391 = vunpack.c.l.b16 %v93
    %v392 = vunpack.c.l.b16 %v94
    %v393 = vunpack.c.l.b16 %v95
    %v394 = vunpack.c.l.b16 %v96
    %v395 = vunpack.c.l.b16 %v97
    %v396 = vunpack.c.l.b16 %v98
    %v397 = vunpack.c.l.b16 %v99
    %v398 = vunpack.c.l.b16 %v100
    %v399 = vunpack.c.l.b16 %v101
    %v400 = vunpack.c.l.b16 %v102
    %v401 = vunpack.c.l.b16 %v103
    %v402 = vunpack.c.l.b16 %v104
    %v403 = vpack.c.b16 %v388, %v387
    %v404 = vpack.c.b16 %v390, %v389
    %v405 = vpack.c.b16 %v392, %v391
    %v406 = vpack.c.b16 %v394, %v393
    %v407 = vpack.c.b16 %v396, %v395
    %v408 = vpack.c.b16 %v398, %v397
    %v409 = vpack.c.b16 %v400, %v399
    %v410 = vpack.c.b16 %v402, %v401
    %419 = vmatprep.subr.bf16.mxu0 0
    %420 = vmatpush1.bf16.msra.mxu0 %v410
    %421 = vmatprep.subr.bf16.mxu0 0
    %422 = vmatpush1.bf16.msra.mxu0 %v409
    %423 = vmatprep.subr.bf16.mxu0 0
    %424 = vmatpush1.bf16.msra.mxu0 %v408
    %425 = vmatprep.subr.bf16.mxu0 0
    %426 = vmatpush1.bf16.msra.mxu0 %v407
    %427 = vmatprep.subr.bf16.mxu0 0
    %428 = vmatpush1.bf16.msra.mxu0 %v406
    %429 = vmatprep.subr.bf16.mxu0 0
    %430 = vmatpush1.bf16.msra.mxu0 %v405
    %431 = vmatprep.subr.bf16.mxu0 0
    %432 = vmatpush1.bf16.msra.mxu0 %v404
    %433 = vmatprep.subr.bf16.mxu0 0
    %434 = vmatpush1.bf16.msra.mxu0 %v403
    %435 = vmatprep.subr.bf16.mxu0 0
    %436 = vmatpush2.bf16.msra.mxu0 0
    %437 = vmatprep.subr.bf16.mxu0 0
    %438 = vmatpush2.bf16.msra.mxu0 0
    %439 = vmatprep.subr.bf16.mxu0 0
    %440 = vmatpush2.bf16.msra.mxu0 0
    %441 = vmatprep.subr.bf16.mxu0 0
    %442 = vmatpush2.bf16.msra.mxu0 0
    %443 = vmatprep.subr.bf16.mxu0 0
    %444 = vmatpush2.bf16.msra.mxu0 0
    %445 = vmatprep.subr.bf16.mxu0 0
    %446 = vmatpush2.bf16.msra.mxu0 0
    %447 = vmatprep.subr.bf16.mxu0 0
    %448 = vmatpush2.bf16.msra.mxu0 0
    %449 = vmatprep.subr.bf16.mxu0 0
    %450 = vmatpush2.bf16.msra.mxu0 0
    %451 = vmatprep.mubr.bf16.mxu0 0
    %452 = vmatmul.mubr.bf16.gmra.mxu0 %v366
    %v453 = vpop.f32.mrf.mxu0
    %v454 = vadd.f32 %v370, %v453
    %v455 = vpop.f32.mrf.mxu0
    %v456 = vpop.f32.mrf.mxu0
    %v457 = vpop.f32.mrf.mxu0
    %458 = vdwg.mxu0
    %vm459 = vcmask 64512
    %460 = vst.msk [vmem:[#allocation8] sm:$0xff] %vm459, %v454
    // Predicated region
    $region26: #{densenet_forward.1} parent=1 // pred_check
      _
    $region27: #{densenet_forward.1} parent=1 // pred_check_branch
      %462 = sbr.rel (0) target = $region29
    $region28: #{densenet_forward.1} parent=1 // pred_region
      %s464 = ssub.s32 128, 128
      %465 = vsyncadd [#allocation4], %s464
      %s467 = sshll.u32 [#allocation8], 4
      %s468 = int_to_ptr.vmem [resolvable:$true] %s467
      %470 = dma.vmem_to_hbm [thread:$0]  %s468, 128, %s3, [#allocation4]
    $region29: #{densenet_forward.1} parent=1 // pred_fallthru
      _
    // Predicated region
    $region30: #{densenet_forward.1} parent=1 // pred_check
      _
    $region31: #{densenet_forward.1} parent=1 // pred_check_branch
      %472 = sbr.rel (0) target = $region33
    $region32: #{densenet_forward.1} parent=1 // pred_region
      %473 = dma.done [#allocation4], 128
    $region33: #{densenet_forward.1} parent=1 // pred_fallthru
      _
    %474 = vsyncpa [#allocation3], 1
    %475 = vsyncpa [#allocation6], 1
    %476 = vsyncpa [#allocation4], 1

</llo_original>
